<compile_context>
chip_gen: v6e
topology: v6e:2x2x1
jax: 0.10.0
libtpu: 0.0.40
codegen_flags: <defaults>
</compile_context>

<pallas_src>
import functools
import math

import jax
import jax.numpy as jnp
from jax.experimental import pallas as pl
from jax.experimental.pallas import tpu as pltpu


_LANE = 128
_TARGET_TILE_BYTES = 2 * 1024 * 1024  # per-buffer tile budget; 4 double-buffered
                                      # copies (~8 MiB) fit v5e/v6e/v7x scoped VMEM.


def _sublane_multiple(dtype) -> int:
    itemsize = jnp.dtype(dtype).itemsize
    return {4: 8, 2: 16, 1: 32}.get(itemsize, 8)


def _pick_tile_rows(rows: int, row_bytes: int, dtype) -> int:
    """Largest row tile that keeps one buffer <= ~2 MiB and obeys the sublane
    packing multiple (8 for 4-byte, 16 for 2-byte, 32 for 1-byte dtypes)."""
    sub = _sublane_multiple(dtype)
    target = max(1, _TARGET_TILE_BYTES // max(row_bytes, 1))
    if rows <= target:
        return rows  # single / full-dim block is always a legal block shape
    tile = (target // sub) * sub
    return max(sub, tile)


def _minmax2d_kernel(num_fast: int, x_ref, y_ref):
    # x_ref / y_ref tile: (tile_rows, 2 * num_fast); lane-dense, pure VPU work.
    a = x_ref[:, :num_fast]
    b = x_ref[:, num_fast:]
    y_ref[:, :num_fast] = jnp.maximum(a, b)
    y_ref[:, num_fast:] = jnp.minimum(a, b)


def _minmax3d_kernel(x_ref, y_ref):
    # Fallback tile: (tile_rows, 2, num_fast) for non-lane-aligned num_fast.
    a = x_ref[:, 0, :]
    b = x_ref[:, 1, :]
    y_ref[:, 0, :] = jnp.maximum(a, b)
    y_ref[:, 1, :] = jnp.minimum(a, b)


def minmax(x: jax.Array, mode_in: int, num_ch: int) -> jax.Array:
    """Pallas implementation of the MinMax module forward pass."""
    if num_ch % 2 != 0:
        raise ValueError("The number of input channels must be divisible by 2.")
    shape = x.shape
    if shape[mode_in] != num_ch:
        raise ValueError(f"axis {mode_in} has size {shape[mode_in]}, expected {num_ch}")

    num_slow = math.prod(shape[:mode_in]) if mode_in > 0 else 1
    num_fast = math.prod(shape[mode_in + 1:]) if mode_in + 1 < len(shape) else 1
    num_blk = num_ch // 2
    rows = num_slow * num_blk

    itemsize = jnp.dtype(x.dtype).itemsize
    nelem = rows * 2 * num_fast
    cost = pl.CostEstimate(flops=nelem, transcendentals=0,
                           bytes_accessed=2 * nelem * itemsize)
    cparams = pltpu.CompilerParams(dimension_semantics=("parallel",))

    if num_fast % _LANE == 0:
        # Fast path: lane-dense 2D layout (rows, 2*num_fast).  This is a
        # zero-copy view of the contiguous input; max lands in the first half
        # of each row and min in the second half -- exactly the layout produced
        # by torch.cat((max, min), dim=2).
        width = 2 * num_fast
        x_r = x.reshape(rows, width)
        tile_rows = _pick_tile_rows(rows, width * itemsize, x.dtype)
        grid = (pl.cdiv(rows, tile_rows),)
        y_r = pl.pallas_call(
            functools.partial(_minmax2d_kernel, num_fast),
            out_shape=jax.ShapeDtypeStruct((rows, width), x.dtype),
            grid=grid,
            in_specs=[pl.BlockSpec((tile_rows, width), lambda i: (i, 0))],
            out_specs=pl.BlockSpec((tile_rows, width), lambda i: (i, 0)),
            compiler_params=cparams,
            cost_estimate=cost,
        )(x_r)
    else:
        # Fallback: keep (rows, 2, num_fast); last two block dims equal the full
        # array dims so the (8,128) constraint is satisfied for any num_fast.
        x_r = x.reshape(rows, 2, num_fast)
        tile_rows = _pick_tile_rows(rows, 2 * num_fast * itemsize, x.dtype)
        grid = (pl.cdiv(rows, tile_rows),)
        y_r = pl.pallas_call(
            _minmax3d_kernel,
            out_shape=jax.ShapeDtypeStruct((rows, 2, num_fast), x.dtype),
            grid=grid,
            in_specs=[pl.BlockSpec((tile_rows, 2, num_fast), lambda i: (i, 0, 0))],
            out_specs=pl.BlockSpec((tile_rows, 2, num_fast), lambda i: (i, 0, 0)),
            compiler_params=cparams,
            cost_estimate=cost,
        )(x_r)

    return y_r.reshape(shape)


def _minmax_ref(x: jax.Array, mode_in: int, num_ch: int) -> jax.Array:
    """Pure-JAX reference mirroring the PyTorch forward."""
    shape = x.shape
    num_slow = math.prod(shape[:mode_in]) if mode_in > 0 else 1
    num_fast = math.prod(shape[mode_in + 1:]) if mode_in + 1 < len(shape) else 1
    num_blk = num_ch // 2
    xr = x.reshape(num_slow, num_blk, 2, num_fast)
    mx = jnp.maximum(xr[:, :, 0, :], xr[:, :, 1, :])
    mn = jnp.minimum(xr[:, :, 0, :], xr[:, :, 1, :])
    return jnp.concatenate([mx, mn], axis=2).reshape(shape)


if __name__ == "__main__":
    key = jax.random.PRNGKey(0)
    k0, k1, k2 = jax.random.split(key, 3)

    # Primary test: NCHW input, channel pairing (mode_in=1) -> 2D lane-dense path.
    mode_in, num_ch = 1, 4
    B, C, H, W = 2, num_ch, 16, 16
    x = jax.random.normal(k0, (B, C, H, W), dtype=jnp.float32)
    y = jax.block_until_ready(minmax(x, mode_in, num_ch))
    assert y.shape == x.shape and y.dtype == x.dtype
    assert jnp.allclose(y, _minmax_ref(x, mode_in, num_ch)), "f32 mismatch"

    # bf16 input (exercises the sublane-multiple-of-16 tile rule).
    xb = jax.random.normal(k1, (B, num_ch, H, W), dtype=jnp.bfloat16)
    yb = jax.block_until_ready(minmax(xb, mode_in, num_ch))
    assert jnp.array_equal(yb, _minmax_ref(xb, mode_in, num_ch)), "bf16 mismatch"

    # Non-lane-aligned num_fast (H*W = 96) -> 3D fallback path.
    xc = jax.random.normal(k2, (2, num_ch, 8, 12), dtype=jnp.float32)
    yc = jax.block_until_ready(minmax(xc, mode_in, num_ch))
    assert jnp.allclose(yc, _minmax_ref(xc, mode_in, num_ch)), "fallback mismatch"

    print("KERNEL_OK")
</pallas_src>

<mosaic_0001>
module attributes {stable_mosaic.version = 11 : i64} {
  func.func @_minmax2d_kernel(%arg0: i32, %arg1: memref<4x512xf32, #tpu.memory_space<vmem>>, %arg2: memref<4x512xf32, #tpu.memory_space<vmem>>) attributes {dimension_semantics = [#tpu.dimension_semantics<parallel>], iteration_bounds = array<i64: 1>, scalar_prefetch = 0 : i64, scratch_operands = 0 : i64, tpu.core_type = #tpu.core_type<tc>, window_params = [{transform_indices = @transform_0, window_bounds = array<i64: 4, 512>}, {transform_indices = @transform_1, window_bounds = array<i64: 4, 512>}]} {
    %c0 = arith.constant 0 : index
    %c0_0 = arith.constant 0 : index
    %0 = vector.load %arg1[%c0, %c0_0] : memref<4x512xf32, #tpu.memory_space<vmem>>, vector<4x256xf32>
    %c0_1 = arith.constant 0 : index
    %c256 = arith.constant 256 : index
    %1 = vector.load %arg1[%c0_1, %c256] : memref<4x512xf32, #tpu.memory_space<vmem>>, vector<4x256xf32>
    %2 = arith.maximumf %0, %1 : vector<4x256xf32>
    %c0_2 = arith.constant 0 : index
    %c0_3 = arith.constant 0 : index
    %3 = vector.load %arg2[%c0_2, %c0_3] : memref<4x512xf32, #tpu.memory_space<vmem>>, vector<4x256xf32>
    tpu.vector_store %arg2[%c0_2, %c0_3], %2 {strides = array<i32>} : memref<4x512xf32, #tpu.memory_space<vmem>>, vector<4x256xf32>,
    %4 = arith.minimumf %0, %1 : vector<4x256xf32>
    %c0_4 = arith.constant 0 : index
    %c256_5 = arith.constant 256 : index
    %5 = vector.load %arg2[%c0_4, %c256_5] : memref<4x512xf32, #tpu.memory_space<vmem>>, vector<4x256xf32>
    tpu.vector_store %arg2[%c0_4, %c256_5], %4 {strides = array<i32>} : memref<4x512xf32, #tpu.memory_space<vmem>>, vector<4x256xf32>,
    return
  }
  func.func @transform_0(%arg0: i32) -> (i32, i32) {
    %c0_i32 = arith.constant 0 : i32
    %c0_i32_0 = arith.constant 0 : i32
    return %arg0, %c0_i32 : i32, i32
  }
  func.func @transform_1(%arg0: i32) -> (i32, i32) {
    %c0_i32 = arith.constant 0 : i32
    %c0_i32_0 = arith.constant 0 : i32
    return %arg0, %c0_i32 : i32, i32
  }
}

</mosaic_0001>

<llo_original>
// kernel: tpu_custom_call.1
$region0: #{tpu_custom_call.1}
  #allocation0 [shape = 'u32[]', space=smem, size = 0x4, offset = 0x4, fixed_abs, tag = 'smem constant byte address 0x4 - core index']
  #allocation1 [shape = 'u32[144,128]{1,0:T(1,128)}', space=vmem, size = 0x12000, scoped, tag = 'internal scratch']
  %s0 = inlined_call_operand.hbm [shape: f32[4,512], index: 0, kind: input, shape index: {}]
  %s1 = inlined_call_operand.hbm [shape: f32[4,512], index: 1, kind: output, shape index: {}]
  %s2 = sld [smem:[#allocation0]]
  $region18: #{tpu_custom_call.1} parent=0
    _
  %s4 = ssub.s32 1, %s2
  %s5 = scalar_select 0, %s4, %s2
  $region1: #{tpu_custom_call.1} parent=0
    #allocation2 [shape = 'u8[8192]{0}', space=vmem, size = 0x2000, scoped, tag = 'input window, operand 0, single buffered']
    #allocation3 [shape = 's32[1]{0}', space=sflag, size = 0x4, scoped, tag = 'scoped memory for tpu_custom_call.1']
    #allocation4 [shape = 's32[1]{0}', space=sflag, size = 0x4, scoped, tag = 'scoped memory for tpu_custom_call.1']
    #allocation5 [shape = 'u8[8192]{0}', space=vmem, size = 0x2000, scoped, tag = 'output window, operand 0, single buffered']
    %6 = vsyncpa [#allocation3], 0
    %7 = vsyncpa [#allocation4], 0
    // Predicated region
    $region2: #{tpu_custom_call.1} parent=1 // pred_check
      _
    $region3: #{tpu_custom_call.1} parent=1 // pred_check_branch
      %9 = sbr.rel (0) target = $region5
    $region4: #{tpu_custom_call.1} parent=1 // pred_region
      %s11 = ssub.s32 256, 256
      %12 = vsyncadd [#allocation3], %s11
      %s14 = sshll.u32 [#allocation2], 4
      %s15 = int_to_ptr.vmem [resolvable:$true] %s14
      %17 = dma.hbm_to_vmem [thread:$0]  %s0, 256, %s15, [#allocation3]
    $region5: #{tpu_custom_call.1} parent=1 // pred_fallthru
      _
    // Predicated region
    $region6: #{tpu_custom_call.1} parent=1 // pred_check
      _
    $region7: #{tpu_custom_call.1} parent=1 // pred_check_branch
      %19 = sbr.rel (0) target = $region9
    $region8: #{tpu_custom_call.1} parent=1 // pred_region
      %20 = dma.done [#allocation3], 256
    $region9: #{tpu_custom_call.1} parent=1 // pred_fallthru
      _
    %v21 = vld [vmem:[#allocation2] sm:$0xff]
    %v22 = vld [vmem:[#allocation2 + $0x8] sm:$0xff]
    %v23 = vmax.f32 %v21, %v22
    %24 = vst [vmem:[#allocation5] sm:$0xff] %v23
    %v25 = vmin.f32 %v21, %v22
    %26 = vst [vmem:[#allocation5 + $0x8] sm:$0xff] %v25
    // Predicated region
    $region10: #{tpu_custom_call.1} parent=1 // pred_check
      _
    $region11: #{tpu_custom_call.1} parent=1 // pred_check_branch
      %28 = sbr.rel (0) target = $region13
    $region12: #{tpu_custom_call.1} parent=1 // pred_region
      %s30 = ssub.s32 256, 256
      %31 = vsyncadd [#allocation4], %s30
      %s33 = sshll.u32 [#allocation5], 4
      %s34 = int_to_ptr.vmem [resolvable:$true] %s33
      %36 = dma.vmem_to_hbm [thread:$0]  %s34, 256, %s1, [#allocation4]
    $region13: #{tpu_custom_call.1} parent=1 // pred_fallthru
      _
    // Predicated region
    $region14: #{tpu_custom_call.1} parent=1 // pred_check
      _
    $region15: #{tpu_custom_call.1} parent=1 // pred_check_branch
      %38 = sbr.rel (0) target = $region17
    $region16: #{tpu_custom_call.1} parent=1 // pred_region
      %39 = dma.done [#allocation4], 256
    $region17: #{tpu_custom_call.1} parent=1 // pred_fallthru
      _
    %40 = vsyncpa [#allocation3], 1
    %41 = vsyncpa [#allocation4], 1

</llo_original>
